<compile_context>
chip_gen: v7x
topology: tpu7x:2x2x1
jax: 0.10.0
libtpu: 0.0.40
codegen_flags: <defaults>
</compile_context>

<pallas_src>
import functools

import jax
import jax.numpy as jnp
from jax.experimental import pallas as pl
from jax.experimental.pallas import tpu as pltpu


def _ffn_kernel(x_ref, w13_ref, b13_ref, w2_ref, b2_ref, o_ref, acc_ref):
    # Grid: (row_tiles, k_tiles); k (hidden-dim reduction) is the last axis.
    k = pl.program_id(1)
    tk = w13_ref.shape[-1] // 2  # static: block is (d_in, 2*tk) = [w1_k | w3_k]

    @pl.when(k == 0)
    def _init():
        acc_ref[...] = jnp.zeros_like(acc_ref)

    # Fused up-projection: one MXU pass produces [h1 | h3] for this hidden tile.
    # Inputs stay in their native dtype (bf16-friendly); accumulate in f32.
    h = jnp.dot(x_ref[...], w13_ref[...], preferred_element_type=jnp.float32)
    h = h + b13_ref[...].astype(jnp.float32)
    h1 = h[:, :tk]          # linear1 output tile
    h3 = h[:, tk:]          # linear3 (gate) output tile
    gated = (h1 * jax.nn.sigmoid(h1)) * h3   # SiLU(h1) * h3, f32 elementwise

    # Down-projection partial sum for this hidden tile (f32 accumulation).
    acc_ref[...] += jnp.dot(
        gated.astype(w2_ref.dtype), w2_ref[...], preferred_element_type=jnp.float32
    )

    @pl.when(k == pl.num_programs(1) - 1)
    def _finalize():
        # Add b2 exactly once, then cast to the output dtype.
        o_ref[...] = (acc_ref[...] + b2_ref[...].astype(jnp.float32)).astype(o_ref.dtype)


def _round_up(x, m):
    return ((x + m - 1) // m) * m


@functools.partial(jax.jit, static_argnames=("tm", "tk"))
def feed_forward(x, w1, b1, w2, b2, w3, b3, *, tm=256, tk=None):
    """Gated-MLP forward.

    x: (batch, seq, d_in).  Weights are stored transposed for `x @ W`:
      w1, w3: (d_in, d_hid);  w2: (d_hid, d_in);  biases are 1-D.
    """
    batch, seq, d_in = x.shape
    d_hid = w1.shape[1]
    m = batch * seq

    # ---- tile selection --------------------------------------------------
    tm = min(tm, _round_up(m, 8))            # don't over-pad tiny inputs
    m_pad = _round_up(m, tm)
    if tk is None:                            # largest 128-multiple divisor, else full
        tk = next((c for c in (1024, 512, 256, 128) if d_hid % c == 0), d_hid)
    assert d_hid % tk == 0, "hidden dim must be divisible by the k tile"
    kt = d_hid // tk

    # ---- wrapper-side layout prep -----------------------------------------
    x2d = x.reshape(m, d_in)
    if m_pad != m:
        x2d = jnp.pad(x2d, ((0, m_pad - m), (0, 0)))

    # Fuse w1/w3 so column-block k of w13 is [w1_tile_k | w3_tile_k] (lane-contiguous).
    w13 = jnp.concatenate(
        [w1.reshape(d_in, kt, tk), w3.reshape(d_in, kt, tk)], axis=-1
    ).reshape(d_in, 2 * d_hid)
    b13 = jnp.concatenate(
        [b1.reshape(kt, tk), b3.reshape(kt, tk)], axis=-1
    ).reshape(1, 2 * d_hid)
    b2_2d = b2.reshape(1, d_in)

    grid = (m_pad // tm, kt)
    out = pl.pallas_call(
        _ffn_kernel,
        out_shape=jax.ShapeDtypeStruct((m_pad, d_in), x.dtype),
        grid_spec=pltpu.PrefetchScalarGridSpec(
            num_scalar_prefetch=0,
            grid=grid,
            in_specs=[
                pl.BlockSpec((tm, d_in), lambda i, k: (i, 0)),       # x row tile
                pl.BlockSpec((d_in, 2 * tk), lambda i, k: (0, k)),   # [w1_k | w3_k]
                pl.BlockSpec((1, 2 * tk), lambda i, k: (0, k)),      # [b1_k | b3_k]
                pl.BlockSpec((tk, d_in), lambda i, k: (k, 0)),       # w2 k-tile
                pl.BlockSpec((1, d_in), lambda i, k: (0, 0)),        # b2 (finalize only)
            ],
            out_specs=pl.BlockSpec((tm, d_in), lambda i, k: (i, 0)),
            scratch_shapes=[pltpu.VMEM((tm, d_in), jnp.float32)],    # f32 accumulator
        ),
        compiler_params=pltpu.CompilerParams(
            dimension_semantics=("parallel", "arbitrary"),
            vmem_limit_bytes=64 * 1024 * 1024,
        ),
    )(x2d, w13, b13, w2, b2_2d)
    return out[:m].reshape(batch, seq, d_in)


def _reference(x, w1, b1, w2, b2, w3, b3):
    h1 = jax.nn.silu(x @ w1 + b1)
    h3 = x @ w3 + b3
    return (h1 * h3) @ w2 + b2


if __name__ == "__main__":
    # ---- test 1: module-sized toy shapes (f32) ----------------------------
    batch, seq, d_in, d_hid = 2, 8, 32, 64
    key = jax.random.PRNGKey(0)
    kx, k1, k2, k3, kb1, kb2, kb3 = jax.random.split(key, 7)

    x = jax.random.normal(kx, (batch, seq, d_in), dtype=jnp.float32)
    w1 = jax.random.normal(k1, (d_in, d_hid), dtype=jnp.float32) * 0.05
    b1 = jax.random.normal(kb1, (d_hid,), dtype=jnp.float32) * 0.05
    w3 = jax.random.normal(k3, (d_in, d_hid), dtype=jnp.float32) * 0.05
    b3 = jax.random.normal(kb3, (d_hid,), dtype=jnp.float32) * 0.05
    w2 = jax.random.normal(k2, (d_hid, d_in), dtype=jnp.float32) * 0.05
    b2 = jax.random.normal(kb2, (d_in,), dtype=jnp.float32) * 0.05

    y = jax.block_until_ready(feed_forward(x, w1, b1, w2, b2, w3, b3))
    y_ref = _reference(x, w1, b1, w2, b2, w3, b3)
    assert y.shape == (batch, seq, d_in)
    assert jnp.allclose(y, y_ref, atol=1e-4, rtol=1e-4), float(jnp.max(jnp.abs(y - y_ref)))

    # ---- test 2: multiple k-tiles + row padding (exercises the accumulator) ----
    b2_, s2_, din2, dhid2 = 2, 24, 128, 256
    kx2, k12, k22, k32 = jax.random.split(jax.random.PRNGKey(1), 4)
    x2 = jax.random.normal(kx2, (b2_, s2_, din2), dtype=jnp.float32)
    w1b = jax.random.normal(k12, (din2, dhid2), dtype=jnp.float32) * 0.05
    w3b = jax.random.normal(k32, (din2, dhid2), dtype=jnp.float32) * 0.05
    w2b = jax.random.normal(k22, (dhid2, din2), dtype=jnp.float32) * 0.05
    b1b = jnp.full((dhid2,), 0.01, jnp.float32)
    b3b = jnp.full((dhid2,), -0.02, jnp.float32)
    b2b = jnp.full((din2,), 0.03, jnp.float32)

    y2 = jax.block_until_ready(
        feed_forward(x2, w1b, b1b, w2b, b2b, w3b, b3b, tm=32, tk=128)  # grid (2, 2), rows padded
    )
    y2_ref = _reference(x2, w1b, b1b, w2b, b2b, w3b, b3b)
    assert jnp.allclose(y2, y2_ref, atol=5e-4, rtol=5e-4), float(jnp.max(jnp.abs(y2 - y2_ref)))

    # ---- test 3: bf16 inputs/weights (native-dtype MXU path, f32 accumulation) ----
    y_bf16 = jax.block_until_ready(
        feed_forward(
            x.astype(jnp.bfloat16),
            w1.astype(jnp.bfloat16), b1.astype(jnp.bfloat16),
            w2.astype(jnp.bfloat16), b2.astype(jnp.bfloat16),
            w3.astype(jnp.bfloat16), b3.astype(jnp.bfloat16),
        )
    )
    assert y_bf16.dtype == jnp.bfloat16
    assert bool(jnp.all(jnp.isfinite(y_bf16.astype(jnp.float32))))
    assert jnp.allclose(y_bf16.astype(jnp.float32), y_ref, atol=0.1, rtol=0.1)

    print("KERNEL_OK")
</pallas_src>

<mosaic_0001>
module attributes {stable_mosaic.version = 11 : i64} {
  func.func @_ffn_kernel(%arg0: i32, %arg1: i32, %arg2: memref<16x32xf32, #tpu.memory_space<vmem>>, %arg3: memref<32x128xf32, #tpu.memory_space<vmem>>, %arg4: memref<1x128xf32, #tpu.memory_space<vmem>>, %arg5: memref<64x32xf32, #tpu.memory_space<vmem>>, %arg6: memref<1x32xf32, #tpu.memory_space<vmem>>, %arg7: memref<16x32xf32, #tpu.memory_space<vmem>>, %arg8: memref<16x32xf32, #tpu.memory_space<vmem>>) attributes {dimension_semantics = [#tpu.dimension_semantics<parallel>, #tpu.dimension_semantics<arbitrary>], iteration_bounds = array<i64: 1, 1>, scalar_prefetch = 0 : i64, scratch_operands = 1 : i64, tpu.core_type = #tpu.core_type<tc>, window_params = [{transform_indices = @transform_0, window_bounds = array<i64: 16, 32>}, {transform_indices = @transform_1, window_bounds = array<i64: 32, 128>}, {transform_indices = @transform_2, window_bounds = array<i64: 1, 128>}, {transform_indices = @transform_3, window_bounds = array<i64: 64, 32>}, {pipeline_mode = #tpu.pipeline_mode<synchronous>, transform_indices = @transform_4, window_bounds = array<i64: 1, 32>}, {transform_indices = @transform_5, window_bounds = array<i64: 16, 32>}]} {
    %c0_i32 = arith.constant 0 : i32
    %0 = arith.cmpi eq, %arg1, %c0_i32 : i32
    %1 = arith.extui %0 : i1 to i32
    %c0_i32_0 = arith.constant 0 : i32
    %2 = arith.cmpi ne, %1, %c0_i32_0 : i32
    scf.if %2 {
      %cst_16 = arith.constant 0.000000e+00 : f32
      %26 = vector.broadcast %cst_16 : f32 to vector<16x32xf32>
      %c0_17 = arith.constant 0 : index
      %c0_18 = arith.constant 0 : index
      %27 = vector.load %arg8[%c0_17, %c0_18] : memref<16x32xf32, #tpu.memory_space<vmem>>, vector<16x32xf32>
      tpu.vector_store %arg8[%c0_17, %c0_18], %26 {strides = array<i32>} : memref<16x32xf32, #tpu.memory_space<vmem>>, vector<16x32xf32>,
    } else {
    }
    %c0 = arith.constant 0 : index
    %c0_1 = arith.constant 0 : index
    %3 = vector.load %arg2[%c0, %c0_1] : memref<16x32xf32, #tpu.memory_space<vmem>>, vector<16x32xf32>
    %c0_2 = arith.constant 0 : index
    %c0_3 = arith.constant 0 : index
    %4 = vector.load %arg3[%c0_2, %c0_3] : memref<32x128xf32, #tpu.memory_space<vmem>>, vector<32x128xf32>
    %cst = arith.constant dense<0.000000e+00> : vector<16x128xf32>
    %5 = tpu.matmul %3, %4, %cst {dimension_numbers = #tpu.dot_dimension_numbers<[1], [0], [0], [1], [0, 0, 1, 1], [], []>} : vector<16x32xf32>, vector<32x128xf32>, vector<16x128xf32> -> vector<16x128xf32>
    %c0_4 = arith.constant 0 : index
    %c0_5 = arith.constant 0 : index
    %6 = vector.load %arg4[%c0_4, %c0_5] : memref<1x128xf32, #tpu.memory_space<vmem>>, vector<1x128xf32>
    %7 = vector.broadcast %6 : vector<1x128xf32> to vector<16x128xf32>
    %8 = arith.addf %5, %7 : vector<16x128xf32>
    %9 = vector.extract_strided_slice %8 {offsets = [0, 0], sizes = [16, 64], strides = [1, 1]} : vector<16x128xf32> to vector<16x64xf32>
    %10 = vector.extract_strided_slice %8 {offsets = [0, 64], sizes = [16, 64], strides = [1, 1]} : vector<16x128xf32> to vector<16x64xf32>
    %11 = arith.negf %9 : vector<16x64xf32>
    %12 = math.exp %11 : vector<16x64xf32>
    %cst_6 = arith.constant 1.000000e+00 : f32
    %13 = vector.broadcast %cst_6 : f32 to vector<16x64xf32>
    %14 = arith.addf %13, %12 : vector<16x64xf32>
    %15 = arith.divf %13, %14 : vector<16x64xf32>
    %16 = arith.mulf %9, %15 : vector<16x64xf32>
    %17 = arith.mulf %16, %10 : vector<16x64xf32>
    %c0_7 = arith.constant 0 : index
    %c0_8 = arith.constant 0 : index
    %18 = vector.load %arg8[%c0_7, %c0_8] : memref<16x32xf32, #tpu.memory_space<vmem>>, vector<16x32xf32>
    %c0_9 = arith.constant 0 : index
    %c0_10 = arith.constant 0 : index
    %19 = vector.load %arg5[%c0_9, %c0_10] : memref<64x32xf32, #tpu.memory_space<vmem>>, vector<64x32xf32>
    %cst_11 = arith.constant dense<0.000000e+00> : vector<16x32xf32>
    %20 = tpu.matmul %17, %19, %cst_11 {dimension_numbers = #tpu.dot_dimension_numbers<[1], [0], [0], [1], [0, 0, 1, 1], [], []>} : vector<16x64xf32>, vector<64x32xf32>, vector<16x32xf32> -> vector<16x32xf32>
    %21 = arith.addf %18, %20 : vector<16x32xf32>
    %c0_12 = arith.constant 0 : index
    %c0_13 = arith.constant 0 : index
    %22 = vector.load %arg8[%c0_12, %c0_13] : memref<16x32xf32, #tpu.memory_space<vmem>>, vector<16x32xf32>
    tpu.vector_store %arg8[%c0_12, %c0_13], %21 {strides = array<i32>} : memref<16x32xf32, #tpu.memory_space<vmem>>, vector<16x32xf32>,
    %c0_i32_14 = arith.constant 0 : i32
    %23 = arith.cmpi eq, %arg1, %c0_i32_14 : i32
    %24 = arith.extui %23 : i1 to i32
    %c0_i32_15 = arith.constant 0 : i32
    %25 = arith.cmpi ne, %24, %c0_i32_15 : i32
    scf.if %25 {
      %c0_16 = arith.constant 0 : index
      %c0_17 = arith.constant 0 : index
      %26 = vector.load %arg8[%c0_16, %c0_17] : memref<16x32xf32, #tpu.memory_space<vmem>>, vector<16x32xf32>
      %c0_18 = arith.constant 0 : index
      %c0_19 = arith.constant 0 : index
      %27 = vector.load %arg6[%c0_18, %c0_19] : memref<1x32xf32, #tpu.memory_space<vmem>>, vector<1x32xf32>
      %28 = vector.broadcast %27 : vector<1x32xf32> to vector<16x32xf32>
      %29 = arith.addf %26, %28 : vector<16x32xf32>
      %c0_20 = arith.constant 0 : index
      %c0_21 = arith.constant 0 : index
      %30 = vector.load %arg7[%c0_20, %c0_21] : memref<16x32xf32, #tpu.memory_space<vmem>>, vector<16x32xf32>
      tpu.vector_store %arg7[%c0_20, %c0_21], %29 {strides = array<i32>} : memref<16x32xf32, #tpu.memory_space<vmem>>, vector<16x32xf32>,
    } else {
    }
    return
  }
  func.func @transform_0(%arg0: i32, %arg1: i32) -> (i32, i32) {
    %c0_i32 = arith.constant 0 : i32
    %c0_i32_0 = arith.constant 0 : i32
    return %arg0, %c0_i32 : i32, i32
  }
  func.func @transform_1(%arg0: i32, %arg1: i32) -> (i32, i32) {
    %c0_i32 = arith.constant 0 : i32
    %c0_i32_0 = arith.constant 0 : i32
    return %c0_i32, %arg1 : i32, i32
  }
  func.func @transform_2(%arg0: i32, %arg1: i32) -> (i32, i32) {
    %c0_i32 = arith.constant 0 : i32
    %c0_i32_0 = arith.constant 0 : i32
    return %c0_i32, %arg1 : i32, i32
  }
  func.func @transform_3(%arg0: i32, %arg1: i32) -> (i32, i32) {
    %c0_i32 = arith.constant 0 : i32
    %c0_i32_0 = arith.constant 0 : i32
    return %arg1, %c0_i32 : i32, i32
  }
  func.func @transform_4(%arg0: i32, %arg1: i32) -> (i32, i32) {
    %c0_i32 = arith.constant 0 : i32
    %c0_i32_0 = arith.constant 0 : i32
    %c0_i32_1 = arith.constant 0 : i32
    return %c0_i32, %c0_i32_0 : i32, i32
  }
  func.func @transform_5(%arg0: i32, %arg1: i32) -> (i32, i32) {
    %c0_i32 = arith.constant 0 : i32
    %c0_i32_0 = arith.constant 0 : i32
    return %arg0, %c0_i32 : i32, i32
  }
}

</mosaic_0001>

<llo_original>
// kernel: feed_forward.1
$region0: #{feed_forward.1}
  #allocation0 [shape = 'u32[]', space=smem, size = 0x4, offset = 0x4, fixed_abs, tag = 'smem constant byte address 0x4 - core index']
  #allocation1 [shape = 'u32[144,128]{1,0:T(1,128)}', space=vmem, size = 0x12000, scoped, tag = 'internal scratch']
  #allocation2 [shape = 'f32[16,32]{1,0:T(8,128)}', space=vmem, size = 0x2000, scoped, tag = 'scratch operand']
  %s0 = inlined_call_operand.hbm [shape: f32[16,32], index: 0, kind: input, shape index: {}]
  %s1 = inlined_call_operand.hbm [shape: f32[32,128], index: 1, kind: input, shape index: {}]
  %s2 = inlined_call_operand.hbm [shape: f32[1,128], index: 2, kind: input, shape index: {}]
  %s3 = inlined_call_operand.hbm [shape: f32[64,32], index: 3, kind: input, shape index: {}]
  %s4 = inlined_call_operand.hbm [shape: f32[1,32], index: 4, kind: input, shape index: {}]
  %s5 = inlined_call_operand.hbm [shape: f32[16,32], index: 5, kind: output, shape index: {}]
  %s6 = sld [smem:[#allocation0]]
  $region58: #{feed_forward.1} parent=0
    _
  %s8 = ssub.s32 1, %s6
  %s9 = scalar_select 0, %s8, %s6
  $region1: #{feed_forward.1} parent=0
    #allocation3 [shape = 'u8[8192]{0}', space=vmem, size = 0x2000, scoped, tag = 'input window, operand 0, single buffered']
    #allocation4 [shape = 's32[1]{0}', space=sflag, size = 0x4, scoped, tag = 'scoped memory for feed_forward.1']
    #allocation5 [shape = 's32[1]{0}', space=sflag, size = 0x4, scoped, tag = 'scoped memory for feed_forward.1']
    #allocation6 [shape = 'u8[16384]{0}', space=vmem, size = 0x4000, scoped, tag = 'input window, operand 1, single buffered']
    #allocation7 [shape = 's32[1]{0}', space=sflag, size = 0x4, scoped, tag = 'scoped memory for feed_forward.1']
    #allocation8 [shape = 'u8[512]{0}', space=vmem, size = 0x400, scoped, tag = 'input window, operand 2, single buffered']
    #allocation9 [shape = 'u8[32768]{0}', space=vmem, size = 0x8000, scoped, tag = 'input window, operand 3, single buffered']
    #allocation10 [shape = 's32[1]{0}', space=sflag, size = 0x4, scoped, tag = 'scoped memory for feed_forward.1']
    #allocation11 [shape = 'u8[512]{0}', space=vmem, size = 0x400, scoped, tag = 'input window, operand 4, single buffered']
    #allocation12 [shape = 'u8[8192]{0}', space=vmem, size = 0x2000, scoped, tag = 'output window, operand 0, single buffered']
    %10 = vsyncpa [#allocation4], 0
    %11 = vsyncpa [#allocation7], 0
    %12 = vsyncpa [#allocation10], 0
    %13 = vsyncpa [#allocation5], 0
    // Predicated region
    $region2: #{feed_forward.1} parent=1 // pred_check
      _
    $region3: #{feed_forward.1} parent=1 // pred_check_branch
      %15 = sbr.rel (0) target = $region5
    $region4: #{feed_forward.1} parent=1 // pred_region
      %s17 = ssub.s32 256, 256
      %18 = vsyncadd [#allocation4], %s17
      %s19 = sshll.u32 [#allocation3], 4
      %s20 = int_to_ptr.vmem [resolvable:$true] %s19
      %25 = dma.hbm_to_vmem [thread:$0]  %s0, 256, %s20, [#allocation4], 128, 128, 8
    $region5: #{feed_forward.1} parent=1 // pred_fallthru
      _
    // Predicated region
    $region6: #{feed_forward.1} parent=1 // pred_check
      _
    $region7: #{feed_forward.1} parent=1 // pred_check_branch
      %27 = sbr.rel (0) target = $region9
    $region8: #{feed_forward.1} parent=1 // pred_region
      %s29 = ssub.s32 512, 512
      %30 = vsyncadd [#allocation7], %s29
      %s31 = sshll.u32 [#allocation6], 4
      %s32 = int_to_ptr.vmem [resolvable:$true] %s31
      %37 = dma.hbm_to_vmem [thread:$0]  %s1, 512, %s32, [#allocation7], 128, 128, 8
    $region9: #{feed_forward.1} parent=1 // pred_fallthru
      _
    // Predicated region
    $region10: #{feed_forward.1} parent=1 // pred_check
      _
    $region11: #{feed_forward.1} parent=1 // pred_check_branch
      %39 = sbr.rel (0) target = $region13
    $region12: #{feed_forward.1} parent=1 // pred_region
      %s41 = ssub.s32 16, 16
      %42 = vsyncadd [#allocation7], %s41
      %s44 = sshll.u32 [#allocation8], 4
      %s45 = int_to_ptr.vmem [resolvable:$true] %s44
      %47 = dma.hbm_to_vmem [thread:$0]  %s2, 16, %s45, [#allocation7]
    $region13: #{feed_forward.1} parent=1 // pred_fallthru
      _
    // Predicated region
    $region14: #{feed_forward.1} parent=1 // pred_check
      _
    $region15: #{feed_forward.1} parent=1 // pred_check_branch
      %49 = sbr.rel (0) target = $region17
    $region16: #{feed_forward.1} parent=1 // pred_region
      %s51 = ssub.s32 1024, 1024
      %52 = vsyncadd [#allocation10], %s51
      %s53 = sshll.u32 [#allocation9], 4
      %s54 = int_to_ptr.vmem [resolvable:$true] %s53
      %59 = dma.hbm_to_vmem [thread:$0]  %s3, 1024, %s54, [#allocation10], 128, 128, 8
    $region17: #{feed_forward.1} parent=1 // pred_fallthru
      _
    // Predicated region
    $region18: #{feed_forward.1} parent=1 // pred_check
      _
    $region19: #{feed_forward.1} parent=1 // pred_check_branch
      %61 = sbr.rel (0) target = $region21
    $region20: #{feed_forward.1} parent=1 // pred_region
      %s63 = ssub.s32 16, 16
      %64 = vsyncadd [#allocation10], %s63
      %s66 = sshll.u32 [#allocation11], 4
      %s67 = int_to_ptr.vmem [resolvable:$true] %s66
      %69 = dma.hbm_to_vmem [thread:$0]  %s4, 16, %s67, [#allocation10]
    $region21: #{feed_forward.1} parent=1 // pred_fallthru
      _
    // Predicated region
    $region22: #{feed_forward.1} parent=1 // pred_check
      _
    $region23: #{feed_forward.1} parent=1 // pred_check_branch
      %71 = sbr.rel (0) target = $region25
    $region24: #{feed_forward.1} parent=1 // pred_region
      %72 = dma.done [#allocation4], 256
    $region25: #{feed_forward.1} parent=1 // pred_fallthru
      _
    // Predicated region
    $region26: #{feed_forward.1} parent=1 // pred_check
      _
    $region27: #{feed_forward.1} parent=1 // pred_check_branch
      %74 = sbr.rel (0) target = $region29
    $region28: #{feed_forward.1} parent=1 // pred_region
      %75 = dma.done [#allocation7], 512
    $region29: #{feed_forward.1} parent=1 // pred_fallthru
      _
    // Predicated region
    $region30: #{feed_forward.1} parent=1 // pred_check
      _
    $region31: #{feed_forward.1} parent=1 // pred_check_branch
      %77 = sbr.rel (0) target = $region33
    $region32: #{feed_forward.1} parent=1 // pred_region
      %78 = dma.done [#allocation7], 16
    $region33: #{feed_forward.1} parent=1 // pred_fallthru
      _
    // Predicated region
    $region34: #{feed_forward.1} parent=1 // pred_check
      _
    $region35: #{feed_forward.1} parent=1 // pred_check_branch
      %80 = sbr.rel (0) target = $region37
    $region36: #{feed_forward.1} parent=1 // pred_region
      %81 = dma.done [#allocation10], 1024
    $region37: #{feed_forward.1} parent=1 // pred_fallthru
      _
    // Predicated region
    $region38: #{feed_forward.1} parent=1 // pred_check
      _
    $region39: #{feed_forward.1} parent=1 // pred_check_branch
      %83 = sbr.rel (0) target = $region41
    $region40: #{feed_forward.1} parent=1 // pred_region
      %84 = dma.done [#allocation10], 16
    $region41: #{feed_forward.1} parent=1 // pred_fallthru
      _
    %p85 = scmp.eq.s32.totalorder 0, 0
    // Predicated region
    $region42: #{feed_forward.1} parent=1 // pred_check
      %p86 = pneg %p85
    $region43: #{feed_forward.1} parent=1 // pred_check_branch
      %88 = sbr.rel (%p86) target = $region45
    $region44: #{feed_forward.1} parent=1 // pred_region
      %vm89 = vcmask 261120
      %90 = vst.msk [vmem:[#allocation2] sm:$0xff] %vm89, 0.0
      %91 = vst.msk [vmem:[#allocation2 + $0x8] sm:$0xff] %vm89, 0.0
    $region45: #{feed_forward.1} parent=1 // pred_fallthru
      _
    %v92 = vld [vmem:[#allocation3] sm:$0xff]
    %v93 = vld [vmem:[#allocation3 + $0x8] sm:$0xff]
    %v94 = vld [vmem:[#allocation6] sm:$0xff]
    %v95 = vld [vmem:[#allocation6 + $0x8] sm:$0xff]
    %v96 = vld [vmem:[#allocation6 + $0x10] sm:$0xff]
    %v97 = vld [vmem:[#allocation6 + $0x18] sm:$0xff]
    %v98 = vld [vmem:[#allocation8] sm:$0x1]
    %v100 = vlaneseq
    %v101 = vshrl.u32 %v100, 7
    %v102 = vsub.s32 0, %v101
    %v103 = vrot.slane %v98, %v102
    %vm105 = vcmask 261120
    %v107 = vsel %vm105, %v92, 0
    %v110 = vsel %vm105, %v93, 0
    %112 = vmatprep.subr.mxu0 0.0
    %113 = vmatpush1.msra.mxu0 %v94
    %114 = vmatprep.subr.mxu0 0.0
    %115 = vmatpush1.msra.mxu0 %v95
    %116 = vmatprep.subr.mxu0 0.0
    %117 = vmatpush1.msra.mxu0 %v96
    %118 = vmatprep.subr.mxu0 0.0
    %119 = vmatpush1.msra.mxu0 %v97
    %120 = vmatprep.subr.mxu0 0.0
    %121 = vmatpush1.msra.mxu0 0.0
    %122 = vmatprep.subr.mxu0 0.0
    %123 = vmatpush1.msra.mxu0 0.0
    %124 = vmatprep.subr.mxu0 0.0
    %125 = vmatpush1.msra.mxu0 0.0
    %126 = vmatprep.subr.mxu0 0.0
    %127 = vmatpush1.msra.mxu0 0.0
    %128 = vmatprep.subr.mxu0 0.0
    %129 = vmatpush1.msra.mxu0 0.0
    %130 = vmatprep.subr.mxu0 0.0
    %131 = vmatpush1.msra.mxu0 0.0
    %132 = vmatprep.subr.mxu0 0.0
    %133 = vmatpush1.msra.mxu0 0.0
    %134 = vmatprep.subr.mxu0 0.0
    %135 = vmatpush1.msra.mxu0 0.0
    %136 = vmatprep.subr.mxu0 0.0
    %137 = vmatpush1.msra.mxu0 0.0
    %138 = vmatprep.subr.mxu0 0.0
    %139 = vmatpush1.msra.mxu0 0.0
    %140 = vmatprep.subr.mxu0 0.0
    %141 = vmatpush1.msra.mxu0 0.0
    %142 = vmatprep.subr.mxu0 0.0
    %143 = vmatpush1.msra.mxu0 0.0
    %144 = vmatprep.subr.mxu0 0.0
    %145 = vmatpush1.msra.mxu0 0.0
    %146 = vmatprep.subr.mxu0 0.0
    %147 = vmatpush1.msra.mxu0 0.0
    %148 = vmatprep.subr.mxu0 0.0
    %149 = vmatpush1.msra.mxu0 0.0
    %150 = vmatprep.subr.mxu0 0.0
    %151 = vmatpush1.msra.mxu0 0.0
    %152 = vmatprep.subr.mxu0 0.0
    %153 = vmatpush1.msra.mxu0 0.0
    %154 = vmatprep.subr.mxu0 0.0
    %155 = vmatpush1.msra.mxu0 0.0
    %156 = vmatprep.subr.mxu0 0.0
    %157 = vmatpush1.msra.mxu0 0.0
    %158 = vmatprep.subr.mxu0 0.0
    %159 = vmatpush1.msra.mxu0 0.0
    %160 = vmatprep.subr.mxu0 0.0
    %161 = vmatpush1.msra.mxu0 0.0
    %162 = vmatprep.subr.mxu0 0.0
    %163 = vmatpush1.msra.mxu0 0.0
    %164 = vmatprep.subr.mxu0 0.0
    %165 = vmatpush1.msra.mxu0 0.0
    %166 = vmatprep.subr.mxu0 0.0
    %167 = vmatpush1.msra.mxu0 0.0
    %168 = vmatprep.subr.mxu0 0.0
    %169 = vmatpush1.msra.mxu0 0.0
    %170 = vmatprep.subr.mxu0 0.0
    %171 = vmatpush1.msra.mxu0 0.0
    %172 = vmatprep.subr.mxu0 0.0
    %173 = vmatpush1.msra.mxu0 0.0
    %174 = vmatprep.subr.mxu0 0.0
    %175 = vmatpush1.msra.mxu0 0.0
    %176 = vmatprep.mubr.f32.mxu0 0.0
    %177 = vmatmul.mubr.f32.gmra.mrb[0].mxu0 %v107
    %v178 = vpop.f32.mrb[0].mxu0
    %v179 = vadd.f32 %v103, %v178
    %v180 = vpop.f32.mrb[0].mxu0
    %181 = vmatprep.mubr.f32.mxu0 0.0
    %182 = vmatmul.mubr.f32.gmra.mrb[0].mxu0 %v110
    %v183 = vpop.f32.mrb[0].mxu0
    %v184 = vadd.f32 %v103, %v183
    %v185 = vpop.f32.mrb[0].mxu0
    %186 = vdwg.mxu0
    %v187 = vxor.u32 %v179, 2147483648
    %v188 = vxor.u32 %v184, 2147483648
    %v189 = vmul.f32 %v187, 1.442695
    %v190 = vpow.pop %v189
    %v191 = vmul.f32 %v188, 1.442695
    %v192 = vpow.pop %v191
    %v193 = vadd.f32 %v190, 1.0
    %v194 = vadd.f32 %v192, 1.0
    %v195 = vrcp.pop %v193
    %v196 = vmul.f32 1.0, %v195
    %v197 = vrcp.pop %v194
    %v198 = vmul.f32 1.0, %v197
    %v199 = vmul.f32 %v179, %v196
    %v200 = vmul.f32 %v184, %v198
    %203 = vrot.lane.b32.xlu0 %v179, 64
    %v204 = vpop.permute.xlu0 %203
    %205 = vrot.lane.b32.xlu0 %v184, 64
    %v206 = vpop.permute.xlu0 %205
    %v209 = vmul.f32 %v199, %v204
    %v210 = vmul.f32 %v200, %v206
    %v211 = vld [vmem:[#allocation2] sm:$0xff]
    %v212 = vld [vmem:[#allocation2 + $0x8] sm:$0xff]
    %v213 = vld [vmem:[#allocation9] sm:$0xff]
    %v214 = vld [vmem:[#allocation9 + $0x8] sm:$0xff]
    %v215 = vld [vmem:[#allocation9 + $0x10] sm:$0xff]
    %v216 = vld [vmem:[#allocation9 + $0x18] sm:$0xff]
    %v217 = vld [vmem:[#allocation9 + $0x20] sm:$0xff]
    %v218 = vld [vmem:[#allocation9 + $0x28] sm:$0xff]
    %v219 = vld [vmem:[#allocation9 + $0x30] sm:$0xff]
    %v220 = vld [vmem:[#allocation9 + $0x38] sm:$0xff]
    %vm221 = vcmask 523264
    %v223 = vsel %vm221, %v209, 0
    %v226 = vsel %vm221, %v210, 0
    %228 = vmatprep.subr.mxu0 0.0
    %229 = vmatpush1.msra.mxu0 %v213
    %230 = vmatprep.subr.mxu0 0.0
    %231 = vmatpush1.msra.mxu0 %v214
    %232 = vmatprep.subr.mxu0 0.0
    %233 = vmatpush1.msra.mxu0 %v215
    %234 = vmatprep.subr.mxu0 0.0
    %235 = vmatpush1.msra.mxu0 %v216
    %236 = vmatprep.subr.mxu0 0.0
    %237 = vmatpush1.msra.mxu0 %v217
    %238 = vmatprep.subr.mxu0 0.0
    %239 = vmatpush1.msra.mxu0 %v218
    %240 = vmatprep.subr.mxu0 0.0
    %241 = vmatpush1.msra.mxu0 %v219
    %242 = vmatprep.subr.mxu0 0.0
    %243 = vmatpush1.msra.mxu0 %v220
    %244 = vmatprep.subr.mxu0 0.0
    %245 = vmatpush1.msra.mxu0 0.0
    %246 = vmatprep.subr.mxu0 0.0
    %247 = vmatpush1.msra.mxu0 0.0
    %248 = vmatprep.subr.mxu0 0.0
    %249 = vmatpush1.msra.mxu0 0.0
    %250 = vmatprep.subr.mxu0 0.0
    %251 = vmatpush1.msra.mxu0 0.0
    %252 = vmatprep.subr.mxu0 0.0
    %253 = vmatpush1.msra.mxu0 0.0
    %254 = vmatprep.subr.mxu0 0.0
    %255 = vmatpush1.msra.mxu0 0.0
    %256 = vmatprep.subr.mxu0 0.0
    %257 = vmatpush1.msra.mxu0 0.0
    %258 = vmatprep.subr.mxu0 0.0
    %259 = vmatpush1.msra.mxu0 0.0
    %260 = vmatprep.subr.mxu0 0.0
    %261 = vmatpush1.msra.mxu0 0.0
    %262 = vmatprep.subr.mxu0 0.0
    %263 = vmatpush1.msra.mxu0 0.0
    %264 = vmatprep.subr.mxu0 0.0
    %265 = vmatpush1.msra.mxu0 0.0
    %266 = vmatprep.subr.mxu0 0.0
    %267 = vmatpush1.msra.mxu0 0.0
    %268 = vmatprep.subr.mxu0 0.0
    %269 = vmatpush1.msra.mxu0 0.0
    %270 = vmatprep.subr.mxu0 0.0
    %271 = vmatpush1.msra.mxu0 0.0
    %272 = vmatprep.subr.mxu0 0.0
    %273 = vmatpush1.msra.mxu0 0.0
    %274 = vmatprep.subr.mxu0 0.0
    %275 = vmatpush1.msra.mxu0 0.0
    %276 = vmatprep.subr.mxu0 0.0
    %277 = vmatpush1.msra.mxu0 0.0
    %278 = vmatprep.subr.mxu0 0.0
    %279 = vmatpush1.msra.mxu0 0.0
    %280 = vmatprep.subr.mxu0 0.0
    %281 = vmatpush1.msra.mxu0 0.0
    %282 = vmatprep.subr.mxu0 0.0
    %283 = vmatpush1.msra.mxu0 0.0
    %284 = vmatprep.subr.mxu0 0.0
    %285 = vmatpush1.msra.mxu0 0.0
    %286 = vmatprep.subr.mxu0 0.0
    %287 = vmatpush1.msra.mxu0 0.0
    %288 = vmatprep.subr.mxu0 0.0
    %289 = vmatpush1.msra.mxu0 0.0
    %290 = vmatprep.subr.mxu0 0.0
    %291 = vmatpush1.msra.mxu0 0.0
    %292 = vmatprep.mubr.f32.mxu0 0.0
    %293 = vmatmul.mubr.f32.gmra.mrb[0].mxu0 %v223
    %v294 = vpop.f32.mrb[0].mxu0
    %v295 = vadd.f32 0.0, %v294
    %v296 = vpop.f32.mrb[0].mxu0
    %297 = vmatprep.mubr.f32.mxu0 0.0
    %298 = vmatmul.mubr.f32.gmra.mrb[0].mxu0 %v226
    %v299 = vpop.f32.mrb[0].mxu0
    %v300 = vadd.f32 0.0, %v299
    %v301 = vpop.f32.mrb[0].mxu0
    %302 = vdwg.mxu0
    %v303 = vadd.f32 %v211, %v295
    %v304 = vadd.f32 %v212, %v300
    %305 = vst.msk [vmem:[#allocation2] sm:$0xff] %vm105, %v303
    %306 = vst.msk [vmem:[#allocation2 + $0x8] sm:$0xff] %vm105, %v304
    // Predicated region
    $region46: #{feed_forward.1} parent=1 // pred_check
      %p307 = pneg %p85
    $region47: #{feed_forward.1} parent=1 // pred_check_branch
      %309 = sbr.rel (%p307) target = $region49
    $region48: #{feed_forward.1} parent=1 // pred_region
      %v310 = vld [vmem:[#allocation2] sm:$0xff]
      %v311 = vld [vmem:[#allocation2 + $0x8] sm:$0xff]
      %v312 = vld [vmem:[#allocation11] sm:$0x1]
      %v314 = vlaneseq
      %v315 = vshrl.u32 %v314, 7
      %v316 = vsub.s32 0, %v315
      %v317 = vrot.slane %v312, %v316
      %v319 = vadd.f32 %v310, %v317
      %v320 = vadd.f32 %v311, %v317
      %321 = vst.msk [vmem:[#allocation12] sm:$0xff] %vm105, %v319
      %322 = vst.msk [vmem:[#allocation12 + $0x8] sm:$0xff] %vm105, %v320
    $region49: #{feed_forward.1} parent=1 // pred_fallthru
      _
    // Predicated region
    $region50: #{feed_forward.1} parent=1 // pred_check
      _
    $region51: #{feed_forward.1} parent=1 // pred_check_branch
      %324 = sbr.rel (0) target = $region53
    $region52: #{feed_forward.1} parent=1 // pred_region
      %s326 = ssub.s32 256, 256
      %327 = vsyncadd [#allocation5], %s326
      %s328 = sshll.u32 [#allocation12], 4
      %s329 = int_to_ptr.vmem [resolvable:$true] %s328
      %334 = dma.vmem_to_hbm [thread:$0]  %s329, 256, %s5, [#allocation5], 128, 128, 8
    $region53: #{feed_forward.1} parent=1 // pred_fallthru
      _
    // Predicated region
    $region54: #{feed_forward.1} parent=1 // pred_check
      _
    $region55: #{feed_forward.1} parent=1 // pred_check_branch
      %336 = sbr.rel (0) target = $region57
    $region56: #{feed_forward.1} parent=1 // pred_region
      %337 = dma.done [#allocation5], 256
    $region57: #{feed_forward.1} parent=1 // pred_fallthru
      _
    %338 = vsyncpa [#allocation4], 1
    %339 = vsyncpa [#allocation7], 1
    %340 = vsyncpa [#allocation10], 1
    %341 = vsyncpa [#allocation5], 1

</llo_original>
